<compile_context>
chip_gen: v7x
topology: tpu7x:2x2x1
jax: 0.10.0
libtpu: 0.0.40
codegen_flags: <defaults>
</compile_context>

<pallas_src>
import jax
import jax.numpy as jnp
from jax.experimental import pallas as pl
from jax.experimental.pallas import tpu as pltpu

_LANE = 1024                 # lane-dense width (multiple of 128)
_SMALL_N_THRESHOLD = 1 << 16  # below this, fused XLA beats a kernel launch


def _linear_1x1_kernel(w_ref, b_ref, x_ref, o_ref):
    # w_ref, b_ref: (1,) f32 scalars in SMEM (scalar prefetch).
    # x_ref: (tile_rows, LANE) block in x's native dtype; o_ref: same in f32.
    w = w_ref[0]
    b = b_ref[0]
    o_ref[...] = x_ref[...].astype(jnp.float32) * w + b


def _default_tile_rows():
    """Pick a per-buffer tile that fits the generation's scoped-VMEM default."""
    try:
        kind = jax.devices()[0].device_kind.lower()
    except Exception:
        return 512
    # v5e: 16 MiB default scoped VMEM -> keep 2 MiB tiles (8 MiB double-buffered).
    if "v5" in kind:
        return 512
    # v6e / v7x: 32 MiB default scoped VMEM -> 4 MiB tiles (16 MiB total).
    return 1024


def linear_1x1(x, weight, bias, *, lane=_LANE, max_tile_rows=None):
    """out = x @ weight.T + bias for in_features = out_features = 1.

    x:      (N, 1) float (any floating dtype; streamed natively, computed in f32)
    weight: (1, 1) float32   (PyTorch nn.Linear.weight layout: (out, in))
    bias:   (1,)   float32
    returns (N, 1) float32
    """
    N, F = x.shape
    assert F == 1 and weight.shape == (1, 1) and bias.shape == (1,)

    w_scalar = weight.reshape(()).astype(jnp.float32)
    b_scalar = bias.reshape(()).astype(jnp.float32)

    # ---- small-N fast path: a fused XLA elementwise op beats a kernel launch.
    if N < _SMALL_N_THRESHOLD:
        return x.astype(jnp.float32) * w_scalar + b_scalar

    if max_tile_rows is None:
        max_tile_rows = _default_tile_rows()
    assert max_tile_rows % 16 == 0  # sublane multiple for f32 and packed 16-bit

    w1 = w_scalar.reshape(1)
    b1 = b_scalar.reshape(1)

    # ---- lane-dense re-layout: (N, 1) -> (rows, lane). Stream native dtype.
    flat = x.reshape(-1)
    if not jnp.issubdtype(flat.dtype, jnp.floating):
        flat = flat.astype(jnp.float32)

    padded = pl.cdiv(N, lane) * lane
    if padded != N:
        # Only the ragged case pays this extra pass; N % lane == 0 is zero-copy.
        flat = jnp.pad(flat, (0, padded - N))
    rows = padded // lane
    x2d = flat.reshape(rows, lane)

    # Block shape: either the whole array (any rows) or a tile whose last two
    # dims are (8k, 128k)-aligned; ragged `rows` becomes a partial last block
    # (Pallas pads the read, masks the store) instead of padded garbage traffic.
    tile_rows = rows if rows <= max_tile_rows else max_tile_rows
    grid = (pl.cdiv(rows, tile_rows),)

    out2d = pl.pallas_call(
        _linear_1x1_kernel,
        out_shape=jax.ShapeDtypeStruct((rows, lane), jnp.float32),
        grid_spec=pltpu.PrefetchScalarGridSpec(
            num_scalar_prefetch=2,                 # w, b -> SMEM once, not per step
            grid=grid,
            in_specs=[
                pl.BlockSpec((tile_rows, lane), lambda i, w, b: (i, 0)),
            ],
            out_specs=pl.BlockSpec((tile_rows, lane), lambda i, w, b: (i, 0)),
        ),
        compiler_params=pltpu.CompilerParams(
            dimension_semantics=("parallel",)),
        # TODO(synk): on v7x, dual-TC sharding needs CORE_PARALLEL / pl.core_map;
        # kept plain "parallel" here since one TC already saturates HBM for a
        # pure stream and core-level semantics change codegen.
    )(w1, b1, x2d)

    out_flat = out2d.reshape(-1)
    if padded != N:
        out_flat = out_flat[:N]
    return out_flat.reshape(N, 1)


if __name__ == "__main__":
    key = jax.random.PRNGKey(0)
    k_w, k_b, k_x = jax.random.split(key, 3)

    # Deterministic "nn.Linear(1, 1)" init: uniform(-1, 1) since fan_in = 1.
    weight = jax.random.uniform(k_w, (1, 1), jnp.float32, minval=-1.0, maxval=1.0)
    bias = jax.random.uniform(k_b, (1,), jnp.float32, minval=-1.0, maxval=1.0)

    # Small batch of scalar inputs (e.g. temperatures), shape (N, 1): fast path.
    N = 8
    x = jax.random.normal(k_x, (N, 1), jnp.float32) * 10.0
    out = linear_1x1(x, weight, bias)
    jax.block_until_ready(out)
    ref = x @ weight.T + bias
    assert out.shape == (N, 1)
    assert jnp.allclose(out, ref, atol=1e-6, rtol=1e-6)

    # Ragged, multi-tile batch: exercises the padded partial-last-block path.
    N2 = 300_000
    x2 = jax.random.normal(jax.random.PRNGKey(1), (N2, 1), jnp.float32) * 10.0
    out2 = linear_1x1(x2, weight, bias)
    jax.block_until_ready(out2)
    ref2 = x2 @ weight.T + bias
    assert out2.shape == (N2, 1)
    assert jnp.allclose(out2, ref2, atol=1e-5, rtol=1e-5)

    # Lane-divisible batch: exercises the zero-copy (no pad / no slice) path,
    # plus native-bf16 streaming with the cast done inside the kernel.
    N3 = 512 * 1024
    x3 = (jax.random.normal(jax.random.PRNGKey(2), (N3, 1), jnp.float32) * 10.0
          ).astype(jnp.bfloat16)
    out3 = linear_1x1(x3, weight, bias)
    jax.block_until_ready(out3)
    ref3 = x3.astype(jnp.float32) @ weight.T + bias
    assert out3.shape == (N3, 1)
    assert jnp.allclose(out3, ref3, atol=1e-5, rtol=1e-5)

    print("KERNEL_OK")
</pallas_src>

<mosaic_0001>
module attributes {stable_mosaic.version = 11 : i64} {
  func.func @_linear_1x1_kernel(%arg0: i32, %arg1: memref<1xf32, #tpu.memory_space<smem>>, %arg2: memref<1xf32, #tpu.memory_space<smem>>, %arg3: memref<293x1024xf32, #tpu.memory_space<vmem>>, %arg4: memref<293x1024xf32, #tpu.memory_space<vmem>>) attributes {dimension_semantics = [#tpu.dimension_semantics<parallel>], iteration_bounds = array<i64: 1>, scalar_prefetch = 2 : i64, scratch_operands = 0 : i64, tpu.core_type = #tpu.core_type<tc>, window_params = [{transform_indices = @transform_0, window_bounds = array<i64: 293, 1024>}, {transform_indices = @transform_1, window_bounds = array<i64: 293, 1024>}]} {
    %c0 = arith.constant 0 : index
    %0 = memref.load %arg1[%c0] : memref<1xf32, #tpu.memory_space<smem>>
    %c0_0 = arith.constant 0 : index
    %1 = memref.load %arg2[%c0_0] : memref<1xf32, #tpu.memory_space<smem>>
    %c0_1 = arith.constant 0 : index
    %c0_2 = arith.constant 0 : index
    %2 = vector.load %arg3[%c0_1, %c0_2] : memref<293x1024xf32, #tpu.memory_space<vmem>>, vector<293x1024xf32>
    %3 = vector.broadcast %0 : f32 to vector<293x1024xf32>
    %4 = arith.mulf %2, %3 : vector<293x1024xf32>
    %5 = vector.broadcast %1 : f32 to vector<293x1024xf32>
    %6 = arith.addf %4, %5 : vector<293x1024xf32>
    %c0_3 = arith.constant 0 : index
    %c0_4 = arith.constant 0 : index
    %7 = vector.load %arg4[%c0_3, %c0_4] : memref<293x1024xf32, #tpu.memory_space<vmem>>, vector<293x1024xf32>
    tpu.vector_store %arg4[%c0_3, %c0_4], %6 {strides = array<i32>} : memref<293x1024xf32, #tpu.memory_space<vmem>>, vector<293x1024xf32>,
    return
  }
  func.func @transform_0(%arg0: i32, %arg1: memref<1xf32, #tpu.memory_space<smem>>, %arg2: memref<1xf32, #tpu.memory_space<smem>>) -> (i32, i32) {
    %c0_i32 = arith.constant 0 : i32
    %c0_i32_0 = arith.constant 0 : i32
    return %arg0, %c0_i32 : i32, i32
  }
  func.func @transform_1(%arg0: i32, %arg1: memref<1xf32, #tpu.memory_space<smem>>, %arg2: memref<1xf32, #tpu.memory_space<smem>>) -> (i32, i32) {
    %c0_i32 = arith.constant 0 : i32
    %c0_i32_0 = arith.constant 0 : i32
    return %arg0, %c0_i32 : i32, i32
  }
}

</mosaic_0001>

<llo_original>
// kernel: tpu_custom_call.1
$region0: #{tpu_custom_call.1}
  #allocation0 [shape = 'u32[]', space=smem, size = 0x4, offset = 0x4, fixed_abs, tag = 'smem constant byte address 0x4 - core index']
  #allocation1 [shape = 'u32[144,128]{1,0:T(1,128)}', space=vmem, size = 0x12000, scoped, tag = 'internal scratch']
  #allocation2 [shape = 's32[1]{0}', space=sflag, size = 0x4, scoped, tag = 'scoped memory for tpu_custom_call.1']
  #allocation3 [shape = 'f32[1]{0:T(128)S(6)}', space=smem, size = 0x200, scoped, tag = 'prefetched SMEM operand 0']
  #allocation4 [shape = 'f32[1]{0:T(128)S(6)}', space=smem, size = 0x200, scoped, tag = 'prefetched SMEM operand 1']
  %s0 = inlined_call_operand.<no memory space> [shape: f32[1], index: 0, kind: input, shape index: {}]
  %s1 = inlined_call_operand.<no memory space> [shape: f32[1], index: 1, kind: input, shape index: {}]
  %s2 = inlined_call_operand.hbm [shape: f32[293,1024], index: 2, kind: input, shape index: {}]
  %s3 = inlined_call_operand.hbm [shape: f32[293,1024], index: 3, kind: output, shape index: {}]
  %s4 = sld [smem:[#allocation0]]
  $region18: #{tpu_custom_call.1} parent=0
    _
  %s6 = ssub.s32 1, %s4
  %s7 = scalar_select 0, %s6, %s4
  %8 = sst [smem:[#allocation3]] %s0
  %9 = sst [smem:[#allocation4]] %s1
  $region1: #{tpu_custom_call.1} parent=0
    #allocation5 [shape = 'u8[1212416]{0}', space=vmem, size = 0x128000, scoped, tag = 'input window, operand 2, single buffered']
    #allocation6 [shape = 's32[1]{0}', space=sflag, size = 0x4, scoped, tag = 'scoped memory for tpu_custom_call.1']
    #allocation7 [shape = 's32[1]{0}', space=sflag, size = 0x4, scoped, tag = 'scoped memory for tpu_custom_call.1']
    #allocation8 [shape = 'u8[1212416]{0}', space=vmem, size = 0x128000, scoped, tag = 'output window, operand 0, single buffered']
    %10 = vsyncpa [#allocation6], 0
    %11 = vsyncpa [#allocation7], 0
    // Predicated region
    $region2: #{tpu_custom_call.1} parent=1 // pred_check
      _
    $region3: #{tpu_custom_call.1} parent=1 // pred_check_branch
      %13 = sbr.rel (0) target = $region5
    $region4: #{tpu_custom_call.1} parent=1 // pred_region
      %s15 = ssub.s32 37888, 37888
      %16 = vsyncadd [#allocation6], %s15
      %s17 = sshll.u32 [#allocation5], 4
      %s18 = int_to_ptr.vmem [resolvable:$true] %s17
      %23 = dma.hbm_to_vmem [thread:$0]  %s2, 37888, %s18, [#allocation6], 1024, 1024, 64
    $region5: #{tpu_custom_call.1} parent=1 // pred_fallthru
      _
    // Predicated region
    $region6: #{tpu_custom_call.1} parent=1 // pred_check
      _
    $region7: #{tpu_custom_call.1} parent=1 // pred_check_branch
      %25 = sbr.rel (0) target = $region9
    $region8: #{tpu_custom_call.1} parent=1 // pred_region
      %26 = dma.done [#allocation6], 37888
    $region9: #{tpu_custom_call.1} parent=1 // pred_fallthru
      _
    %s27 = sld [smem:[#allocation3]]
    %s28 = sld [smem:[#allocation4]]
    %v29 = vld [vmem:[#allocation5] sm:$0xff]
    %v30 = vld [vmem:[#allocation5 + $0x8] sm:$0xff]
    %v31 = vld [vmem:[#allocation5 + $0x10] sm:$0xff]
    %v32 = vld [vmem:[#allocation5 + $0x18] sm:$0xff]
    %v33 = vld [vmem:[#allocation5 + $0x20] sm:$0xff]
    %v34 = vld [vmem:[#allocation5 + $0x28] sm:$0xff]
    %v35 = vld [vmem:[#allocation5 + $0x30] sm:$0xff]
    %v36 = vld [vmem:[#allocation5 + $0x38] sm:$0xff]
    %v37 = vld [vmem:[#allocation5 + $0x40] sm:$0xff]
    %v38 = vld [vmem:[#allocation5 + $0x48] sm:$0xff]
    %v39 = vld [vmem:[#allocation5 + $0x50] sm:$0xff]
    %v40 = vld [vmem:[#allocation5 + $0x58] sm:$0xff]
    %v41 = vld [vmem:[#allocation5 + $0x60] sm:$0xff]
    %v42 = vld [vmem:[#allocation5 + $0x68] sm:$0xff]
    %v43 = vld [vmem:[#allocation5 + $0x70] sm:$0xff]
    %v44 = vld [vmem:[#allocation5 + $0x78] sm:$0xff]
    %v45 = vld [vmem:[#allocation5 + $0x80] sm:$0xff]
    %v46 = vld [vmem:[#allocation5 + $0x88] sm:$0xff]
    %v47 = vld [vmem:[#allocation5 + $0x90] sm:$0xff]
    %v48 = vld [vmem:[#allocation5 + $0x98] sm:$0xff]
    %v49 = vld [vmem:[#allocation5 + $0xa0] sm:$0xff]
    %v50 = vld [vmem:[#allocation5 + $0xa8] sm:$0xff]
    %v51 = vld [vmem:[#allocation5 + $0xb0] sm:$0xff]
    %v52 = vld [vmem:[#allocation5 + $0xb8] sm:$0xff]
    %v53 = vld [vmem:[#allocation5 + $0xc0] sm:$0xff]
    %v54 = vld [vmem:[#allocation5 + $0xc8] sm:$0xff]
    %v55 = vld [vmem:[#allocation5 + $0xd0] sm:$0xff]
    %v56 = vld [vmem:[#allocation5 + $0xd8] sm:$0xff]
    %v57 = vld [vmem:[#allocation5 + $0xe0] sm:$0xff]
    %v58 = vld [vmem:[#allocation5 + $0xe8] sm:$0xff]
    %v59 = vld [vmem:[#allocation5 + $0xf0] sm:$0xff]
    %v60 = vld [vmem:[#allocation5 + $0xf8] sm:$0xff]
    %v61 = vld [vmem:[#allocation5 + $0x100] sm:$0xff]
    %v62 = vld [vmem:[#allocation5 + $0x108] sm:$0xff]
    %v63 = vld [vmem:[#allocation5 + $0x110] sm:$0xff]
    %v64 = vld [vmem:[#allocation5 + $0x118] sm:$0xff]
    %v65 = vld [vmem:[#allocation5 + $0x120] sm:$0xff]
    %v66 = vld [vmem:[#allocation5 + $0x128] sm:$0xff]
    %v67 = vld [vmem:[#allocation5 + $0x130] sm:$0xff]
    %v68 = vld [vmem:[#allocation5 + $0x138] sm:$0xff]
    %v69 = vld [vmem:[#allocation5 + $0x140] sm:$0xff]
    %v70 = vld [vmem:[#allocation5 + $0x148] sm:$0xff]
    %v71 = vld [vmem:[#allocation5 + $0x150] sm:$0xff]
    %v72 = vld [vmem:[#allocation5 + $0x158] sm:$0xff]
    %v73 = vld [vmem:[#allocation5 + $0x160] sm:$0xff]
    %v74 = vld [vmem:[#allocation5 + $0x168] sm:$0xff]
    %v75 = vld [vmem:[#allocation5 + $0x170] sm:$0xff]
    %v76 = vld [vmem:[#allocation5 + $0x178] sm:$0xff]
    %v77 = vld [vmem:[#allocation5 + $0x180] sm:$0xff]
    %v78 = vld [vmem:[#allocation5 + $0x188] sm:$0xff]
    %v79 = vld [vmem:[#allocation5 + $0x190] sm:$0xff]
    %v80 = vld [vmem:[#allocation5 + $0x198] sm:$0xff]
    %v81 = vld [vmem:[#allocation5 + $0x1a0] sm:$0xff]
    %v82 = vld [vmem:[#allocation5 + $0x1a8] sm:$0xff]
    %v83 = vld [vmem:[#allocation5 + $0x1b0] sm:$0xff]
    %v84 = vld [vmem:[#allocation5 + $0x1b8] sm:$0xff]
    %v85 = vld [vmem:[#allocation5 + $0x1c0] sm:$0xff]
    %v86 = vld [vmem:[#allocation5 + $0x1c8] sm:$0xff]
    %v87 = vld [vmem:[#allocation5 + $0x1d0] sm:$0xff]
    %v88 = vld [vmem:[#allocation5 + $0x1d8] sm:$0xff]
    %v89 = vld [vmem:[#allocation5 + $0x1e0] sm:$0xff]
    %v90 = vld [vmem:[#allocation5 + $0x1e8] sm:$0xff]
    %v91 = vld [vmem:[#allocation5 + $0x1f0] sm:$0xff]
    %v92 = vld [vmem:[#allocation5 + $0x1f8] sm:$0xff]
    %v93 = vld [vmem:[#allocation5 + $0x200] sm:$0xff]
    %v94 = vld [vmem:[#allocation5 + $0x208] sm:$0xff]
    %v95 = vld [vmem:[#allocation5 + $0x210] sm:$0xff]
    %v96 = vld [vmem:[#allocation5 + $0x218] sm:$0xff]
    %v97 = vld [vmem:[#allocation5 + $0x220] sm:$0xff]
    %v98 = vld [vmem:[#allocation5 + $0x228] sm:$0xff]
    %v99 = vld [vmem:[#allocation5 + $0x230] sm:$0xff]
    %v100 = vld [vmem:[#allocation5 + $0x238] sm:$0xff]
    %v101 = vld [vmem:[#allocation5 + $0x240] sm:$0xff]
    %v102 = vld [vmem:[#allocation5 + $0x248] sm:$0xff]
    %v103 = vld [vmem:[#allocation5 + $0x250] sm:$0xff]
    %v104 = vld [vmem:[#allocation5 + $0x258] sm:$0xff]
    %v105 = vld [vmem:[#allocation5 + $0x260] sm:$0xff]
    %v106 = vld [vmem:[#allocation5 + $0x268] sm:$0xff]
    %v107 = vld [vmem:[#allocation5 + $0x270] sm:$0xff]
    %v108 = vld [vmem:[#allocation5 + $0x278] sm:$0xff]
    %v109 = vld [vmem:[#allocation5 + $0x280] sm:$0xff]
    %v110 = vld [vmem:[#allocation5 + $0x288] sm:$0xff]
    %v111 = vld [vmem:[#allocation5 + $0x290] sm:$0xff]
    %v112 = vld [vmem:[#allocation5 + $0x298] sm:$0xff]
    %v113 = vld [vmem:[#allocation5 + $0x2a0] sm:$0xff]
    %v114 = vld [vmem:[#allocation5 + $0x2a8] sm:$0xff]
    %v115 = vld [vmem:[#allocation5 + $0x2b0] sm:$0xff]
    %v116 = vld [vmem:[#allocation5 + $0x2b8] sm:$0xff]
    %v117 = vld [vmem:[#allocation5 + $0x2c0] sm:$0xff]
    %v118 = vld [vmem:[#allocation5 + $0x2c8] sm:$0xff]
    %v119 = vld [vmem:[#allocation5 + $0x2d0] sm:$0xff]
    %v120 = vld [vmem:[#allocation5 + $0x2d8] sm:$0xff]
    %v121 = vld [vmem:[#allocation5 + $0x2e0] sm:$0xff]
    %v122 = vld [vmem:[#allocation5 + $0x2e8] sm:$0xff]
    %v123 = vld [vmem:[#allocation5 + $0x2f0] sm:$0xff]
    %v124 = vld [vmem:[#allocation5 + $0x2f8] sm:$0xff]
    %v125 = vld [vmem:[#allocation5 + $0x300] sm:$0xff]
    %v126 = vld [vmem:[#allocation5 + $0x308] sm:$0xff]
    %v127 = vld [vmem:[#allocation5 + $0x310] sm:$0xff]
    %v128 = vld [vmem:[#allocation5 + $0x318] sm:$0xff]
    %v129 = vld [vmem:[#allocation5 + $0x320] sm:$0xff]
    %v130 = vld [vmem:[#allocation5 + $0x328] sm:$0xff]
    %v131 = vld [vmem:[#allocation5 + $0x330] sm:$0xff]
    %v132 = vld [vmem:[#allocation5 + $0x338] sm:$0xff]
    %v133 = vld [vmem:[#allocation5 + $0x340] sm:$0xff]
    %v134 = vld [vmem:[#allocation5 + $0x348] sm:$0xff]
    %v135 = vld [vmem:[#allocation5 + $0x350] sm:$0xff]
    %v136 = vld [vmem:[#allocation5 + $0x358] sm:$0xff]
    %v137 = vld [vmem:[#allocation5 + $0x360] sm:$0xff]
    %v138 = vld [vmem:[#allocation5 + $0x368] sm:$0xff]
    %v139 = vld [vmem:[#allocation5 + $0x370] sm:$0xff]
    %v140 = vld [vmem:[#allocation5 + $0x378] sm:$0xff]
    %v141 = vld [vmem:[#allocation5 + $0x380] sm:$0xff]
    %v142 = vld [vmem:[#allocation5 + $0x388] sm:$0xff]
    %v143 = vld [vmem:[#allocation5 + $0x390] sm:$0xff]
    %v144 = vld [vmem:[#allocation5 + $0x398] sm:$0xff]
    %v145 = vld [vmem:[#allocation5 + $0x3a0] sm:$0xff]
    %v146 = vld [vmem:[#allocation5 + $0x3a8] sm:$0xff]
    %v147 = vld [vmem:[#allocation5 + $0x3b0] sm:$0xff]
    %v148 = vld [vmem:[#allocation5 + $0x3b8] sm:$0xff]
    %v149 = vld [vmem:[#allocation5 + $0x3c0] sm:$0xff]
    %v150 = vld [vmem:[#allocation5 + $0x3c8] sm:$0xff]
    %v151 = vld [vmem:[#allocation5 + $0x3d0] sm:$0xff]
    %v152 = vld [vmem:[#allocation5 + $0x3d8] sm:$0xff]
    %v153 = vld [vmem:[#allocation5 + $0x3e0] sm:$0xff]
    %v154 = vld [vmem:[#allocation5 + $0x3e8] sm:$0xff]
    %v155 = vld [vmem:[#allocation5 + $0x3f0] sm:$0xff]
    %v156 = vld [vmem:[#allocation5 + $0x3f8] sm:$0xff]
    %v157 = vld [vmem:[#allocation5 + $0x400] sm:$0xff]
    %v158 = vld [vmem:[#allocation5 + $0x408] sm:$0xff]
    %v159 = vld [vmem:[#allocation5 + $0x410] sm:$0xff]
    %v160 = vld [vmem:[#allocation5 + $0x418] sm:$0xff]
    %v161 = vld [vmem:[#allocation5 + $0x420] sm:$0xff]
    %v162 = vld [vmem:[#allocation5 + $0x428] sm:$0xff]
    %v163 = vld [vmem:[#allocation5 + $0x430] sm:$0xff]
    %v164 = vld [vmem:[#allocation5 + $0x438] sm:$0xff]
    %v165 = vld [vmem:[#allocation5 + $0x440] sm:$0xff]
    %v166 = vld [vmem:[#allocation5 + $0x448] sm:$0xff]
    %v167 = vld [vmem:[#allocation5 + $0x450] sm:$0xff]
    %v168 = vld [vmem:[#allocation5 + $0x458] sm:$0xff]
    %v169 = vld [vmem:[#allocation5 + $0x460] sm:$0xff]
    %v170 = vld [vmem:[#allocation5 + $0x468] sm:$0xff]
    %v171 = vld [vmem:[#allocation5 + $0x470] sm:$0xff]
    %v172 = vld [vmem:[#allocation5 + $0x478] sm:$0xff]
    %v173 = vld [vmem:[#allocation5 + $0x480] sm:$0xff]
    %v174 = vld [vmem:[#allocation5 + $0x488] sm:$0xff]
    %v175 = vld [vmem:[#allocation5 + $0x490] sm:$0xff]
    %v176 = vld [vmem:[#allocation5 + $0x498] sm:$0xff]
    %v177 = vld [vmem:[#allocation5 + $0x4a0] sm:$0xff]
    %v178 = vld [vmem:[#allocation5 + $0x4a8] sm:$0xff]
    %v179 = vld [vmem:[#allocation5 + $0x4b0] sm:$0xff]
    %v180 = vld [vmem:[#allocation5 + $0x4b8] sm:$0xff]
    %v181 = vld [vmem:[#allocation5 + $0x4c0] sm:$0xff]
    %v182 = vld [vmem:[#allocation5 + $0x4c8] sm:$0xff]
    %v183 = vld [vmem:[#allocation5 + $0x4d0] sm:$0xff]
    %v184 = vld [vmem:[#allocation5 + $0x4d8] sm:$0xff]
    %v185 = vld [vmem:[#allocation5 + $0x4e0] sm:$0xff]
    %v186 = vld [vmem:[#allocation5 + $0x4e8] sm:$0xff]
    %v187 = vld [vmem:[#allocation5 + $0x4f0] sm:$0xff]
    %v188 = vld [vmem:[#allocation5 + $0x4f8] sm:$0xff]
    %v189 = vld [vmem:[#allocation5 + $0x500] sm:$0xff]
    %v190 = vld [vmem:[#allocation5 + $0x508] sm:$0xff]
    %v191 = vld [vmem:[#allocation5 + $0x510] sm:$0xff]
    %v192 = vld [vmem:[#allocation5 + $0x518] sm:$0xff]
    %v193 = vld [vmem:[#allocation5 + $0x520] sm:$0xff]
    %v194 = vld [vmem:[#allocation5 + $0x528] sm:$0xff]
    %v195 = vld [vmem:[#allocation5 + $0x530] sm:$0xff]
    %v196 = vld [vmem:[#allocation5 + $0x538] sm:$0xff]
    %v197 = vld [vmem:[#allocation5 + $0x540] sm:$0xff]
    %v198 = vld [vmem:[#allocation5 + $0x548] sm:$0xff]
    %v199 = vld [vmem:[#allocation5 + $0x550] sm:$0xff]
    %v200 = vld [vmem:[#allocation5 + $0x558] sm:$0xff]
    %v201 = vld [vmem:[#allocation5 + $0x560] sm:$0xff]
    %v202 = vld [vmem:[#allocation5 + $0x568] sm:$0xff]
    %v203 = vld [vmem:[#allocation5 + $0x570] sm:$0xff]
    %v204 = vld [vmem:[#allocation5 + $0x578] sm:$0xff]
    %v205 = vld [vmem:[#allocation5 + $0x580] sm:$0xff]
    %v206 = vld [vmem:[#allocation5 + $0x588] sm:$0xff]
    %v207 = vld [vmem:[#allocation5 + $0x590] sm:$0xff]
    %v208 = vld [vmem:[#allocation5 + $0x598] sm:$0xff]
    %v209 = vld [vmem:[#allocation5 + $0x5a0] sm:$0xff]
    %v210 = vld [vmem:[#allocation5 + $0x5a8] sm:$0xff]
    %v211 = vld [vmem:[#allocation5 + $0x5b0] sm:$0xff]
    %v212 = vld [vmem:[#allocation5 + $0x5b8] sm:$0xff]
    %v213 = vld [vmem:[#allocation5 + $0x5c0] sm:$0xff]
    %v214 = vld [vmem:[#allocation5 + $0x5c8] sm:$0xff]
    %v215 = vld [vmem:[#allocation5 + $0x5d0] sm:$0xff]
    %v216 = vld [vmem:[#allocation5 + $0x5d8] sm:$0xff]
    %v217 = vld [vmem:[#allocation5 + $0x5e0] sm:$0xff]
    %v218 = vld [vmem:[#allocation5 + $0x5e8] sm:$0xff]
    %v219 = vld [vmem:[#allocation5 + $0x5f0] sm:$0xff]
    %v220 = vld [vmem:[#allocation5 + $0x5f8] sm:$0xff]
    %v221 = vld [vmem:[#allocation5 + $0x600] sm:$0xff]
    %v222 = vld [vmem:[#allocation5 + $0x608] sm:$0xff]
    %v223 = vld [vmem:[#allocation5 + $0x610] sm:$0xff]
    %v224 = vld [vmem:[#allocation5 + $0x618] sm:$0xff]
    %v225 = vld [vmem:[#allocation5 + $0x620] sm:$0xff]
    %v226 = vld [vmem:[#allocation5 + $0x628] sm:$0xff]
    %v227 = vld [vmem:[#allocation5 + $0x630] sm:$0xff]
    %v228 = vld [vmem:[#allocation5 + $0x638] sm:$0xff]
    %v229 = vld [vmem:[#allocation5 + $0x640] sm:$0xff]
    %v230 = vld [vmem:[#allocation5 + $0x648] sm:$0xff]
    %v231 = vld [vmem:[#allocation5 + $0x650] sm:$0xff]
    %v232 = vld [vmem:[#allocation5 + $0x658] sm:$0xff]
    %v233 = vld [vmem:[#allocation5 + $0x660] sm:$0xff]
    %v234 = vld [vmem:[#allocation5 + $0x668] sm:$0xff]
    %v235 = vld [vmem:[#allocation5 + $0x670] sm:$0xff]
    %v236 = vld [vmem:[#allocation5 + $0x678] sm:$0xff]
    %v237 = vld [vmem:[#allocation5 + $0x680] sm:$0xff]
    %v238 = vld [vmem:[#allocation5 + $0x688] sm:$0xff]
    %v239 = vld [vmem:[#allocation5 + $0x690] sm:$0xff]
    %v240 = vld [vmem:[#allocation5 + $0x698] sm:$0xff]
    %v241 = vld [vmem:[#allocation5 + $0x6a0] sm:$0xff]
    %v242 = vld [vmem:[#allocation5 + $0x6a8] sm:$0xff]
    %v243 = vld [vmem:[#allocation5 + $0x6b0] sm:$0xff]
    %v244 = vld [vmem:[#allocation5 + $0x6b8] sm:$0xff]
    %v245 = vld [vmem:[#allocation5 + $0x6c0] sm:$0xff]
    %v246 = vld [vmem:[#allocation5 + $0x6c8] sm:$0xff]
    %v247 = vld [vmem:[#allocation5 + $0x6d0] sm:$0xff]
    %v248 = vld [vmem:[#allocation5 + $0x6d8] sm:$0xff]
    %v249 = vld [vmem:[#allocation5 + $0x6e0] sm:$0xff]
    %v250 = vld [vmem:[#allocation5 + $0x6e8] sm:$0xff]
    %v251 = vld [vmem:[#allocation5 + $0x6f0] sm:$0xff]
    %v252 = vld [vmem:[#allocation5 + $0x6f8] sm:$0xff]
    %v253 = vld [vmem:[#allocation5 + $0x700] sm:$0xff]
    %v254 = vld [vmem:[#allocation5 + $0x708] sm:$0xff]
    %v255 = vld [vmem:[#allocation5 + $0x710] sm:$0xff]
    %v256 = vld [vmem:[#allocation5 + $0x718] sm:$0xff]
    %v257 = vld [vmem:[#allocation5 + $0x720] sm:$0xff]
    %v258 = vld [vmem:[#allocation5 + $0x728] sm:$0xff]
    %v259 = vld [vmem:[#allocation5 + $0x730] sm:$0xff]
    %v260 = vld [vmem:[#allocation5 + $0x738] sm:$0xff]
    %v261 = vld [vmem:[#allocation5 + $0x740] sm:$0xff]
    %v262 = vld [vmem:[#allocation5 + $0x748] sm:$0xff]
    %v263 = vld [vmem:[#allocation5 + $0x750] sm:$0xff]
    %v264 = vld [vmem:[#allocation5 + $0x758] sm:$0xff]
    %v265 = vld [vmem:[#allocation5 + $0x760] sm:$0xff]
    %v266 = vld [vmem:[#allocation5 + $0x768] sm:$0xff]
    %v267 = vld [vmem:[#allocation5 + $0x770] sm:$0xff]
    %v268 = vld [vmem:[#allocation5 + $0x778] sm:$0xff]
    %v269 = vld [vmem:[#allocation5 + $0x780] sm:$0xff]
    %v270 = vld [vmem:[#allocation5 + $0x788] sm:$0xff]
    %v271 = vld [vmem:[#allocation5 + $0x790] sm:$0xff]
    %v272 = vld [vmem:[#allocation5 + $0x798] sm:$0xff]
    %v273 = vld [vmem:[#allocation5 + $0x7a0] sm:$0xff]
    %v274 = vld [vmem:[#allocation5 + $0x7a8] sm:$0xff]
    %v275 = vld [vmem:[#allocation5 + $0x7b0] sm:$0xff]
    %v276 = vld [vmem:[#allocation5 + $0x7b8] sm:$0xff]
    %v277 = vld [vmem:[#allocation5 + $0x7c0] sm:$0xff]
    %v278 = vld [vmem:[#allocation5 + $0x7c8] sm:$0xff]
    %v279 = vld [vmem:[#allocation5 + $0x7d0] sm:$0xff]
    %v280 = vld [vmem:[#allocation5 + $0x7d8] sm:$0xff]
    %v281 = vld [vmem:[#allocation5 + $0x7e0] sm:$0xff]
    %v282 = vld [vmem:[#allocation5 + $0x7e8] sm:$0xff]
    %v283 = vld [vmem:[#allocation5 + $0x7f0] sm:$0xff]
    %v284 = vld [vmem:[#allocation5 + $0x7f8] sm:$0xff]
    %v285 = vld [vmem:[#allocation5 + $0x800] sm:$0xff]
    %v286 = vld [vmem:[#allocation5 + $0x808] sm:$0xff]
    %v287 = vld [vmem:[#allocation5 + $0x810] sm:$0xff]
    %v288 = vld [vmem:[#allocation5 + $0x818] sm:$0xff]
    %v289 = vld [vmem:[#allocation5 + $0x820] sm:$0xff]
    %v290 = vld [vmem:[#allocation5 + $0x828] sm:$0xff]
    %v291 = vld [vmem:[#allocation5 + $0x830] sm:$0xff]
    %v292 = vld [vmem:[#allocation5 + $0x838] sm:$0xff]
    %v293 = vld [vmem:[#allocation5 + $0x840] sm:$0xff]
    %v294 = vld [vmem:[#allocation5 + $0x848] sm:$0xff]
    %v295 = vld [vmem:[#allocation5 + $0x850] sm:$0xff]
    %v296 = vld [vmem:[#allocation5 + $0x858] sm:$0xff]
    %v297 = vld [vmem:[#allocation5 + $0x860] sm:$0xff]
    %v298 = vld [vmem:[#allocation5 + $0x868] sm:$0xff]
    %v299 = vld [vmem:[#allocation5 + $0x870] sm:$0xff]
    %v300 = vld [vmem:[#allocation5 + $0x878] sm:$0xff]
    %v301 = vld [vmem:[#allocation5 + $0x880] sm:$0xff]
    %v302 = vld [vmem:[#allocation5 + $0x888] sm:$0xff]
    %v303 = vld [vmem:[#allocation5 + $0x890] sm:$0xff]
    %v304 = vld [vmem:[#allocation5 + $0x898] sm:$0xff]
    %v305 = vld [vmem:[#allocation5 + $0x8a0] sm:$0xff]
    %v306 = vld [vmem:[#allocation5 + $0x8a8] sm:$0xff]
    %v307 = vld [vmem:[#allocation5 + $0x8b0] sm:$0xff]
    %v308 = vld [vmem:[#allocation5 + $0x8b8] sm:$0xff]
    %v309 = vld [vmem:[#allocation5 + $0x8c0] sm:$0xff]
    %v310 = vld [vmem:[#allocation5 + $0x8c8] sm:$0xff]
    %v311 = vld [vmem:[#allocation5 + $0x8d0] sm:$0xff]
    %v312 = vld [vmem:[#allocation5 + $0x8d8] sm:$0xff]
    %v313 = vld [vmem:[#allocation5 + $0x8e0] sm:$0xff]
    %v314 = vld [vmem:[#allocation5 + $0x8e8] sm:$0xff]
    %v315 = vld [vmem:[#allocation5 + $0x8f0] sm:$0xff]
    %v316 = vld [vmem:[#allocation5 + $0x8f8] sm:$0xff]
    %v317 = vld [vmem:[#allocation5 + $0x900] sm:$0x1f]
    %v318 = vld [vmem:[#allocation5 + $0x908] sm:$0x1f]
    %v319 = vld [vmem:[#allocation5 + $0x910] sm:$0x1f]
    %v320 = vld [vmem:[#allocation5 + $0x918] sm:$0x1f]
    %v321 = vld [vmem:[#allocation5 + $0x920] sm:$0x1f]
    %v322 = vld [vmem:[#allocation5 + $0x928] sm:$0x1f]
    %v323 = vld [vmem:[#allocation5 + $0x930] sm:$0x1f]
    %v324 = vld [vmem:[#allocation5 + $0x938] sm:$0x1f]
    %v325 = vstv %s27
    %v326 = vmul.f32 %v29, %v325
    %v327 = vmul.f32 %v30, %v325
    %v328 = vmul.f32 %v31, %v325
    %v329 = vmul.f32 %v32, %v325
    %v330 = vmul.f32 %v33, %v325
    %v331 = vmul.f32 %v34, %v325
    %v332 = vmul.f32 %v35, %v325
    %v333 = vmul.f32 %v36, %v325
    %v334 = vmul.f32 %v37, %v325
    %v335 = vmul.f32 %v38, %v325
    %v336 = vmul.f32 %v39, %v325
    %v337 = vmul.f32 %v40, %v325
    %v338 = vmul.f32 %v41, %v325
    %v339 = vmul.f32 %v42, %v325
    %v340 = vmul.f32 %v43, %v325
    %v341 = vmul.f32 %v44, %v325
    %v342 = vmul.f32 %v45, %v325
    %v343 = vmul.f32 %v46, %v325
    %v344 = vmul.f32 %v47, %v325
    %v345 = vmul.f32 %v48, %v325
    %v346 = vmul.f32 %v49, %v325
    %v347 = vmul.f32 %v50, %v325
    %v348 = vmul.f32 %v51, %v325
    %v349 = vmul.f32 %v52, %v325
    %v350 = vmul.f32 %v53, %v325
    %v351 = vmul.f32 %v54, %v325
    %v352 = vmul.f32 %v55, %v325
    %v353 = vmul.f32 %v56, %v325
    %v354 = vmul.f32 %v57, %v325
    %v355 = vmul.f32 %v58, %v325
    %v356 = vmul.f32 %v59, %v325
    %v357 = vmul.f32 %v60, %v325
    %v358 = vmul.f32 %v61, %v325
    %v359 = vmul.f32 %v62, %v325
    %v360 = vmul.f32 %v63, %v325
    %v361 = vmul.f32 %v64, %v325
    %v362 = vmul.f32 %v65, %v325
    %v363 = vmul.f32 %v66, %v325
    %v364 = vmul.f32 %v67, %v325
    %v365 = vmul.f32 %v68, %v325
    %v366 = vmul.f32 %v69, %v325
    %v367 = vmul.f32 %v70, %v325
    %v368 = vmul.f32 %v71, %v325
    %v369 = vmul.f32 %v72, %v325
    %v370 = vmul.f32 %v73, %v325
    %v371 = vmul.f32 %v74, %v325
    %v372 = vmul.f32 %v75, %v325
    %v373 = vmul.f32 %v76, %v325
    %v374 = vmul.f32 %v77, %v325
    %v375 = vmul.f32 %v78, %v325
    %v376 = vmul.f32 %v79, %v325
    %v377 = vmul.f32 %v80, %v325
    %v378 = vmul.f32 %v81, %v325
    %v379 = vmul.f32 %v82, %v325
    %v380 = vmul.f32 %v83, %v325
    %v381 = vmul.f32 %v84, %v325
    %v382 = vmul.f32 %v85, %v325
    %v383 = vmul.f32 %v86, %v325
    %v384 = vmul.f32 %v87, %v325
    %v385 = vmul.f32 %v88, %v325
    %v386 = vmul.f32 %v89, %v325
    %v387 = vmul.f32 %v90, %v325
    %v388 = vmul.f32 %v91, %v325
    %v389 = vmul.f32 %v92, %v325
    %v390 = vmul.f32 %v93, %v325
    %v391 = vmul.f32 %v94, %v325
    %v392 = vmul.f32 %v95, %v325
    %v393 = vmul.f32 %v96, %v325
    %v394 = vmul.f32 %v97, %v325
    %v395 = vmul.f32 %v98, %v325
    %v396 = vmul.f32 %v99, %v325
    %v397 = vmul.f32 %v100, %v325
    %v398 = vmul.f32 %v101, %v325
    %v399 = vmul.f32 %v102, %v325
    %v400 = vmul.f32 %v103, %v325
    %v401 = vmul.f32 %v104, %v325
    %v402 = vmul.f32 %v105, %v325
    %v403 = vmul.f32 %v106, %v325
    %v404 = vmul.f32 %v107, %v325
    %v405 = vmul.f32 %v108, %v325
    %v406 = vmul.f32 %v109, %v325
    %v407 = vmul.f32 %v110, %v325
    %v408 = vmul.f32 %v111, %v325
    %v409 = vmul.f32 %v112, %v325
    %v410 = vmul.f32 %v113, %v325
    %v411 = vmul.f32 %v114, %v325
    %v412 = vmul.f32 %v115, %v325
    %v413 = vmul.f32 %v116, %v325
    %v414 = vmul.f32 %v117, %v325
    %v415 = vmul.f32 %v118, %v325
    %v416 = vmul.f32 %v119, %v325
    %v417 = vmul.f32 %v120, %v325
    %v418 = vmul.f32 %v121, %v325
    %v419 = vmul.f32 %v122, %v325
    %v420 = vmul.f32 %v123, %v325
    %v421 = vmul.f32 %v124, %v325
    %v422 = vmul.f32 %v125, %v325
    %v423 = vmul.f32 %v126, %v325
    %v424 = vmul.f32 %v127, %v325
    %v425 = vmul.f32 %v128, %v325
    %v426 = vmul.f32 %v129, %v325
    %v427 = vmul.f32 %v130, %v325
    %v428 = vmul.f32 %v131, %v325
    %v429 = vmul.f32 %v132, %v325
    %v430 = vmul.f32 %v133, %v325
    %v431 = vmul.f32 %v134, %v325
    %v432 = vmul.f32 %v135, %v325
    %v433 = vmul.f32 %v136, %v325
    %v434 = vmul.f32 %v137, %v325
    %v435 = vmul.f32 %v138, %v325
    %v436 = vmul.f32 %v139, %v325
    %v437 = vmul.f32 %v140, %v325
    %v438 = vmul.f32 %v141, %v325
    %v439 = vmul.f32 %v142, %v325
    %v440 = vmul.f32 %v143, %v325
    %v441 = vmul.f32 %v144, %v325
    %v442 = vmul.f32 %v145, %v325
    %v443 = vmul.f32 %v146, %v325
    %v444 = vmul.f32 %v147, %v325
    %v445 = vmul.f32 %v148, %v325
    %v446 = vmul.f32 %v149, %v325
    %v447 = vmul.f32 %v150, %v325
    %v448 = vmul.f32 %v151, %v325
    %v449 = vmul.f32 %v152, %v325
    %v450 = vmul.f32 %v153, %v325
    %v451 = vmul.f32 %v154, %v325
    %v452 = vmul.f32 %v155, %v325
    %v453 = vmul.f32 %v156, %v325
    %v454 = vmul.f32 %v157, %v325
    %v455 = vmul.f32 %v158, %v325
    %v456 = vmul.f32 %v159, %v325
    %v457 = vmul.f32 %v160, %v325
    %v458 = vmul.f32 %v161, %v325
    %v459 = vmul.f32 %v162, %v325
    %v460 = vmul.f32 %v163, %v325
    %v461 = vmul.f32 %v164, %v325
    %v462 = vmul.f32 %v165, %v325
    %v463 = vmul.f32 %v166, %v325
    %v464 = vmul.f32 %v167, %v325
    %v465 = vmul.f32 %v168, %v325
    %v466 = vmul.f32 %v169, %v325
    %v467 = vmul.f32 %v170, %v325
    %v468 = vmul.f32 %v171, %v325
    %v469 = vmul.f32 %v172, %v325
    %v470 = vmul.f32 %v173, %v325
    %v471 = vmul.f32 %v174, %v325
    %v472 = vmul.f32 %v175, %v325
    %v473 = vmul.f32 %v176, %v325
    %v474 = vmul.f32 %v177, %v325
    %v475 = vmul.f32 %v178, %v325
    %v476 = vmul.f32 %v179, %v325
    %v477 = vmul.f32 %v180, %v325
    %v478 = vmul.f32 %v181, %v325
    %v479 = vmul.f32 %v182, %v325
    %v480 = vmul.f32 %v183, %v325
    %v481 = vmul.f32 %v184, %v325
    %v482 = vmul.f32 %v185, %v325
    %v483 = vmul.f32 %v186, %v325
    %v484 = vmul.f32 %v187, %v325
    %v485 = vmul.f32 %v188, %v325
    %v486 = vmul.f32 %v189, %v325
    %v487 = vmul.f32 %v190, %v325
    %v488 = vmul.f32 %v191, %v325
    %v489 = vmul.f32 %v192, %v325
    %v490 = vmul.f32 %v193, %v325
    %v491 = vmul.f32 %v194, %v325
    %v492 = vmul.f32 %v195, %v325
    %v493 = vmul.f32 %v196, %v325
    %v494 = vmul.f32 %v197, %v325
    %v495 = vmul.f32 %v198, %v325
    %v496 = vmul.f32 %v199, %v325
    %v497 = vmul.f32 %v200, %v325
    %v498 = vmul.f32 %v201, %v325
    %v499 = vmul.f32 %v202, %v325
    %v500 = vmul.f32 %v203, %v325
    %v501 = vmul.f32 %v204, %v325
    %v502 = vmul.f32 %v205, %v325
    %v503 = vmul.f32 %v206, %v325
    %v504 = vmul.f32 %v207, %v325
    %v505 = vmul.f32 %v208, %v325
    %v506 = vmul.f32 %v209, %v325
    %v507 = vmul.f32 %v210, %v325
    %v508 = vmul.f32 %v211, %v325
    %v509 = vmul.f32 %v212, %v325
    %v510 = vmul.f32 %v213, %v325
    %v511 = vmul.f32 %v214, %v325
    %v512 = vmul.f32 %v215, %v325
    %v513 = vmul.f32 %v216, %v325
    %v514 = vmul.f32 %v217, %v325
    %v515 = vmul.f32 %v218, %v325
    %v516 = vmul.f32 %v219, %v325
    %v517 = vmul.f32 %v220, %v325
    %v518 = vmul.f32 %v221, %v325
    %v519 = vmul.f32 %v222, %v325
    %v520 = vmul.f32 %v223, %v325
    %v521 = vmul.f32 %v224, %v325
    %v522 = vmul.f32 %v225, %v325
    %v523 = vmul.f32 %v226, %v325
    %v524 = vmul.f32 %v227, %v325
    %v525 = vmul.f32 %v228, %v325
    %v526 = vmul.f32 %v229, %v325
    %v527 = vmul.f32 %v230, %v325
    %v528 = vmul.f32 %v231, %v325
    %v529 = vmul.f32 %v232, %v325
    %v530 = vmul.f32 %v233, %v325
    %v531 = vmul.f32 %v234, %v325
    %v532 = vmul.f32 %v235, %v325
    %v533 = vmul.f32 %v236, %v325
    %v534 = vmul.f32 %v237, %v325
    %v535 = vmul.f32 %v238, %v325
    %v536 = vmul.f32 %v239, %v325
    %v537 = vmul.f32 %v240, %v325
    %v538 = vmul.f32 %v241, %v325
    %v539 = vmul.f32 %v242, %v325
    %v540 = vmul.f32 %v243, %v325
    %v541 = vmul.f32 %v244, %v325
    %v542 = vmul.f32 %v245, %v325
    %v543 = vmul.f32 %v246, %v325
    %v544 = vmul.f32 %v247, %v325
    %v545 = vmul.f32 %v248, %v325
    %v546 = vmul.f32 %v249, %v325
    %v547 = vmul.f32 %v250, %v325
    %v548 = vmul.f32 %v251, %v325
    %v549 = vmul.f32 %v252, %v325
    %v550 = vmul.f32 %v253, %v325
    %v551 = vmul.f32 %v254, %v325
    %v552 = vmul.f32 %v255, %v325
    %v553 = vmul.f32 %v256, %v325
    %v554 = vmul.f32 %v257, %v325
    %v555 = vmul.f32 %v258, %v325
    %v556 = vmul.f32 %v259, %v325
    %v557 = vmul.f32 %v260, %v325
    %v558 = vmul.f32 %v261, %v325
    %v559 = vmul.f32 %v262, %v325
    %v560 = vmul.f32 %v263, %v325
    %v561 = vmul.f32 %v264, %v325
    %v562 = vmul.f32 %v265, %v325
    %v563 = vmul.f32 %v266, %v325
    %v564 = vmul.f32 %v267, %v325
    %v565 = vmul.f32 %v268, %v325
    %v566 = vmul.f32 %v269, %v325
    %v567 = vmul.f32 %v270, %v325
    %v568 = vmul.f32 %v271, %v325
    %v569 = vmul.f32 %v272, %v325
    %v570 = vmul.f32 %v273, %v325
    %v571 = vmul.f32 %v274, %v325
    %v572 = vmul.f32 %v275, %v325
    %v573 = vmul.f32 %v276, %v325
    %v574 = vmul.f32 %v277, %v325
    %v575 = vmul.f32 %v278, %v325
    %v576 = vmul.f32 %v279, %v325
    %v577 = vmul.f32 %v280, %v325
    %v578 = vmul.f32 %v281, %v325
    %v579 = vmul.f32 %v282, %v325
    %v580 = vmul.f32 %v283, %v325
    %v581 = vmul.f32 %v284, %v325
    %v582 = vmul.f32 %v285, %v325
    %v583 = vmul.f32 %v286, %v325
    %v584 = vmul.f32 %v287, %v325
    %v585 = vmul.f32 %v288, %v325
    %v586 = vmul.f32 %v289, %v325
    %v587 = vmul.f32 %v290, %v325
    %v588 = vmul.f32 %v291, %v325
    %v589 = vmul.f32 %v292, %v325
    %v590 = vmul.f32 %v293, %v325
    %v591 = vmul.f32 %v294, %v325
    %v592 = vmul.f32 %v295, %v325
    %v593 = vmul.f32 %v296, %v325
    %v594 = vmul.f32 %v297, %v325
    %v595 = vmul.f32 %v298, %v325
    %v596 = vmul.f32 %v299, %v325
    %v597 = vmul.f32 %v300, %v325
    %v598 = vmul.f32 %v301, %v325
    %v599 = vmul.f32 %v302, %v325
    %v600 = vmul.f32 %v303, %v325
    %v601 = vmul.f32 %v304, %v325
    %v602 = vmul.f32 %v305, %v325
    %v603 = vmul.f32 %v306, %v325
    %v604 = vmul.f32 %v307, %v325
    %v605 = vmul.f32 %v308, %v325
    %v606 = vmul.f32 %v309, %v325
    %v607 = vmul.f32 %v310, %v325
    %v608 = vmul.f32 %v311, %v325
    %v609 = vmul.f32 %v312, %v325
    %v610 = vmul.f32 %v313, %v325
    %v611 = vmul.f32 %v314, %v325
    %v612 = vmul.f32 %v315, %v325
    %v613 = vmul.f32 %v316, %v325
    %v614 = vmul.f32 %v317, %v325
    %v615 = vmul.f32 %v318, %v325
    %v616 = vmul.f32 %v319, %v325
    %v617 = vmul.f32 %v320, %v325
    %v618 = vmul.f32 %v321, %v325
    %v619 = vmul.f32 %v322, %v325
    %v620 = vmul.f32 %v323, %v325
    %v621 = vmul.f32 %v324, %v325
    %v622 = vstv %s28
    %v623 = vadd.f32 %v326, %v622
    %v624 = vadd.f32 %v327, %v622
    %v625 = vadd.f32 %v328, %v622
    %v626 = vadd.f32 %v329, %v622
    %v627 = vadd.f32 %v330, %v622
    %v628 = vadd.f32 %v331, %v622
    %v629 = vadd.f32 %v332, %v622
    %v630 = vadd.f32 %v333, %v622
    %v631 = vadd.f32 %v334, %v622
    %v632 = vadd.f32 %v335, %v622
    %v633 = vadd.f32 %v336, %v622
    %v634 = vadd.f32 %v337, %v622
    %v635 = vadd.f32 %v338, %v622
    %v636 = vadd.f32 %v339, %v622
    %v637 = vadd.f32 %v340, %v622
    %v638 = vadd.f32 %v341, %v622
    %v639 = vadd.f32 %v342, %v622
    %v640 = vadd.f32 %v343, %v622
    %v641 = vadd.f32 %v344, %v622
    %v642 = vadd.f32 %v345, %v622
    %v643 = vadd.f32 %v346, %v622
    %v644 = vadd.f32 %v347, %v622
    %v645 = vadd.f32 %v348, %v622
    %v646 = vadd.f32 %v349, %v622
    %v647 = vadd.f32 %v350, %v622
    %v648 = vadd.f32 %v351, %v622
    %v649 = vadd.f32 %v352, %v622
    %v650 = vadd.f32 %v353, %v622
    %v651 = vadd.f32 %v354, %v622
    %v652 = vadd.f32 %v355, %v622
    %v653 = vadd.f32 %v356, %v622
    %v654 = vadd.f32 %v357, %v622
    %v655 = vadd.f32 %v358, %v622
    %v656 = vadd.f32 %v359, %v622
    %v657 = vadd.f32 %v360, %v622
    %v658 = vadd.f32 %v361, %v622
    %v659 = vadd.f32 %v362, %v622
    %v660 = vadd.f32 %v363, %v622
    %v661 = vadd.f32 %v364, %v622
    %v662 = vadd.f32 %v365, %v622
    %v663 = vadd.f32 %v366, %v622
    %v664 = vadd.f32 %v367, %v622
    %v665 = vadd.f32 %v368, %v622
    %v666 = vadd.f32 %v369, %v622
    %v667 = vadd.f32 %v370, %v622
    %v668 = vadd.f32 %v371, %v622
    %v669 = vadd.f32 %v372, %v622
    %v670 = vadd.f32 %v373, %v622
    %v671 = vadd.f32 %v374, %v622
    %v672 = vadd.f32 %v375, %v622
    %v673 = vadd.f32 %v376, %v622
    %v674 = vadd.f32 %v377, %v622
    %v675 = vadd.f32 %v378, %v622
    %v676 = vadd.f32 %v379, %v622
    %v677 = vadd.f32 %v380, %v622
    %v678 = vadd.f32 %v381, %v622
    %v679 = vadd.f32 %v382, %v622
    %v680 = vadd.f32 %v383, %v622
    %v681 = vadd.f32 %v384, %v622
    %v682 = vadd.f32 %v385, %v622
    %v683 = vadd.f32 %v386, %v622
    %v684 = vadd.f32 %v387, %v622
    %v685 = vadd.f32 %v388, %v622
    %v686 = vadd.f32 %v389, %v622
    %v687 = vadd.f32 %v390, %v622
    %v688 = vadd.f32 %v391, %v622
    %v689 = vadd.f32 %v392, %v622
    %v690 = vadd.f32 %v393, %v622
    %v691 = vadd.f32 %v394, %v622
    %v692 = vadd.f32 %v395, %v622
    %v693 = vadd.f32 %v396, %v622
    %v694 = vadd.f32 %v397, %v622
    %v695 = vadd.f32 %v398, %v622
    %v696 = vadd.f32 %v399, %v622
    %v697 = vadd.f32 %v400, %v622
    %v698 = vadd.f32 %v401, %v622
    %v699 = vadd.f32 %v402, %v622
    %v700 = vadd.f32 %v403, %v622
    %v701 = vadd.f32 %v404, %v622
    %v702 = vadd.f32 %v405, %v622
    %v703 = vadd.f32 %v406, %v622
    %v704 = vadd.f32 %v407, %v622
    %v705 = vadd.f32 %v408, %v622
    %v706 = vadd.f32 %v409, %v622
    %v707 = vadd.f32 %v410, %v622
    %v708 = vadd.f32 %v411, %v622
    %v709 = vadd.f32 %v412, %v622
    %v710 = vadd.f32 %v413, %v622
    %v711 = vadd.f32 %v414, %v622
    %v712 = vadd.f32 %v415, %v622
    %v713 = vadd.f32 %v416, %v622
    %v714 = vadd.f32 %v417, %v622
    %v715 = vadd.f32 %v418, %v622
    %v716 = vadd.f32 %v419, %v622
    %v717 = vadd.f32 %v420, %v622
    %v718 = vadd.f32 %v421, %v622
    %v719 = vadd.f32 %v422, %v622
    %v720 = vadd.f32 %v423, %v622
    %v721 = vadd.f32 %v424, %v622
    %v722 = vadd.f32 %v425, %v622
    %v723 = vadd.f32 %v426, %v622
    %v724 = vadd.f32 %v427, %v622
    %v725 = vadd.f32 %v428, %v622
    %v726 = vadd.f32 %v429, %v622
    %v727 = vadd.f32 %v430, %v622
    %v728 = vadd.f32 %v431, %v622
    %v729 = vadd.f32 %v432, %v622
    %v730 = vadd.f32 %v433, %v622
    %v731 = vadd.f32 %v434, %v622
    %v732 = vadd.f32 %v435, %v622
    %v733 = vadd.f32 %v436, %v622
    %v734 = vadd.f32 %v437, %v622
    %v735 = vadd.f32 %v438, %v622
    %v736 = vadd.f32 %v439, %v622
    %v737 = vadd.f32 %v440, %v622
    %v738 = vadd.f32 %v441, %v622
    %v739 = vadd.f32 %v442, %v622
    %v740 = vadd.f32 %v443, %v622
    %v741 = vadd.f32 %v444, %v622
    %v742 = vadd.f32 %v445, %v622
    %v743 = vadd.f32 %v446, %v622
    %v744 = vadd.f32 %v447, %v622
    %v745 = vadd.f32 %v448, %v622
    %v746 = vadd.f32 %v449, %v622
    %v747 = vadd.f32 %v450, %v622
    %v748 = vadd.f32 %v451, %v622
    %v749 = vadd.f32 %v452, %v622
    %v750 = vadd.f32 %v453, %v622
    %v751 = vadd.f32 %v454, %v622
    %v752 = vadd.f32 %v455, %v622
    %v753 = vadd.f32 %v456, %v622
    %v754 = vadd.f32 %v457, %v622
    %v755 = vadd.f32 %v458, %v622
    %v756 = vadd.f32 %v459, %v622
    %v757 = vadd.f32 %v460, %v622
    %v758 = vadd.f32 %v461, %v622
    %v759 = vadd.f32 %v462, %v622
    %v760 = vadd.f32 %v463, %v622
    %v761 = vadd.f32 %v464, %v622
    %v762 = vadd.f32 %v465, %v622
    %v763 = vadd.f32 %v466, %v622
    %v764 = vadd.f32 %v467, %v622
    %v765 = vadd.f32 %v468, %v622
    %v766 = vadd.f32 %v469, %v622
    %v767 = vadd.f32 %v470, %v622
    %v768 = vadd.f32 %v471, %v622
    %v769 = vadd.f32 %v472, %v622
    %v770 = vadd.f32 %v473, %v622
    %v771 = vadd.f32 %v474, %v622
    %v772 = vadd.f32 %v475, %v622
    %v773 = vadd.f32 %v476, %v622
    %v774 = vadd.f32 %v477, %v622
    %v775 = vadd.f32 %v478, %v622
    %v776 = vadd.f32 %v479, %v622
    %v777 = vadd.f32 %v480, %v622
    %v778 = vadd.f32 %v481, %v622
    %v779 = vadd.f32 %v482, %v622
    %v780 = vadd.f32 %v483, %v622
    %v781 = vadd.f32 %v484, %v622
    %v782 = vadd.f32 %v485, %v622
    %v783 = vadd.f32 %v486, %v622
    %v784 = vadd.f32 %v487, %v622
    %v785 = vadd.f32 %v488, %v622
    %v786 = vadd.f32 %v489, %v622
    %v787 = vadd.f32 %v490, %v622
    %v788 = vadd.f32 %v491, %v622
    %v789 = vadd.f32 %v492, %v622
    %v790 = vadd.f32 %v493, %v622
    %v791 = vadd.f32 %v494, %v622
    %v792 = vadd.f32 %v495, %v622
    %v793 = vadd.f32 %v496, %v622
    %v794 = vadd.f32 %v497, %v622
    %v795 = vadd.f32 %v498, %v622
    %v796 = vadd.f32 %v499, %v622
    %v797 = vadd.f32 %v500, %v622
    %v798 = vadd.f32 %v501, %v622
    %v799 = vadd.f32 %v502, %v622
    %v800 = vadd.f32 %v503, %v622
    %v801 = vadd.f32 %v504, %v622
    %v802 = vadd.f32 %v505, %v622
    %v803 = vadd.f32 %v506, %v622
    %v804 = vadd.f32 %v507, %v622
    %v805 = vadd.f32 %v508, %v622
    %v806 = vadd.f32 %v509, %v622
    %v807 = vadd.f32 %v510, %v622
    %v808 = vadd.f32 %v511, %v622
    %v809 = vadd.f32 %v512, %v622
    %v810 = vadd.f32 %v513, %v622
    %v811 = vadd.f32 %v514, %v622
    %v812 = vadd.f32 %v515, %v622
    %v813 = vadd.f32 %v516, %v622
    %v814 = vadd.f32 %v517, %v622
    %v815 = vadd.f32 %v518, %v622
    %v816 = vadd.f32 %v519, %v622
    %v817 = vadd.f32 %v520, %v622
    %v818 = vadd.f32 %v521, %v622
    %v819 = vadd.f32 %v522, %v622
    %v820 = vadd.f32 %v523, %v622
    %v821 = vadd.f32 %v524, %v622
    %v822 = vadd.f32 %v525, %v622
    %v823 = vadd.f32 %v526, %v622
    %v824 = vadd.f32 %v527, %v622
    %v825 = vadd.f32 %v528, %v622
    %v826 = vadd.f32 %v529, %v622
    %v827 = vadd.f32 %v530, %v622
    %v828 = vadd.f32 %v531, %v622
    %v829 = vadd.f32 %v532, %v622
    %v830 = vadd.f32 %v533, %v622
    %v831 = vadd.f32 %v534, %v622
    %v832 = vadd.f32 %v535, %v622
    %v833 = vadd.f32 %v536, %v622
    %v834 = vadd.f32 %v537, %v622
    %v835 = vadd.f32 %v538, %v622
    %v836 = vadd.f32 %v539, %v622
    %v837 = vadd.f32 %v540, %v622
    %v838 = vadd.f32 %v541, %v622
    %v839 = vadd.f32 %v542, %v622
    %v840 = vadd.f32 %v543, %v622
    %v841 = vadd.f32 %v544, %v622
    %v842 = vadd.f32 %v545, %v622
    %v843 = vadd.f32 %v546, %v622
    %v844 = vadd.f32 %v547, %v622
    %v845 = vadd.f32 %v548, %v622
    %v846 = vadd.f32 %v549, %v622
    %v847 = vadd.f32 %v550, %v622
    %v848 = vadd.f32 %v551, %v622
    %v849 = vadd.f32 %v552, %v622
    %v850 = vadd.f32 %v553, %v622
    %v851 = vadd.f32 %v554, %v622
    %v852 = vadd.f32 %v555, %v622
    %v853 = vadd.f32 %v556, %v622
    %v854 = vadd.f32 %v557, %v622
    %v855 = vadd.f32 %v558, %v622
    %v856 = vadd.f32 %v559, %v622
    %v857 = vadd.f32 %v560, %v622
    %v858 = vadd.f32 %v561, %v622
    %v859 = vadd.f32 %v562, %v622
    %v860 = vadd.f32 %v563, %v622
    %v861 = vadd.f32 %v564, %v622
    %v862 = vadd.f32 %v565, %v622
    %v863 = vadd.f32 %v566, %v622
    %v864 = vadd.f32 %v567, %v622
    %v865 = vadd.f32 %v568, %v622
    %v866 = vadd.f32 %v569, %v622
    %v867 = vadd.f32 %v570, %v622
    %v868 = vadd.f32 %v571, %v622
    %v869 = vadd.f32 %v572, %v622
    %v870 = vadd.f32 %v573, %v622
    %v871 = vadd.f32 %v574, %v622
    %v872 = vadd.f32 %v575, %v622
    %v873 = vadd.f32 %v576, %v622
    %v874 = vadd.f32 %v577, %v622
    %v875 = vadd.f32 %v578, %v622
    %v876 = vadd.f32 %v579, %v622
    %v877 = vadd.f32 %v580, %v622
    %v878 = vadd.f32 %v581, %v622
    %v879 = vadd.f32 %v582, %v622
    %v880 = vadd.f32 %v583, %v622
    %v881 = vadd.f32 %v584, %v622
    %v882 = vadd.f32 %v585, %v622
    %v883 = vadd.f32 %v586, %v622
    %v884 = vadd.f32 %v587, %v622
    %v885 = vadd.f32 %v588, %v622
    %v886 = vadd.f32 %v589, %v622
    %v887 = vadd.f32 %v590, %v622
    %v888 = vadd.f32 %v591, %v622
    %v889 = vadd.f32 %v592, %v622
    %v890 = vadd.f32 %v593, %v622
    %v891 = vadd.f32 %v594, %v622
    %v892 = vadd.f32 %v595, %v622
    %v893 = vadd.f32 %v596, %v622
    %v894 = vadd.f32 %v597, %v622
    %v895 = vadd.f32 %v598, %v622
    %v896 = vadd.f32 %v599, %v622
    %v897 = vadd.f32 %v600, %v622
    %v898 = vadd.f32 %v601, %v622
    %v899 = vadd.f32 %v602, %v622
    %v900 = vadd.f32 %v603, %v622
    %v901 = vadd.f32 %v604, %v622
    %v902 = vadd.f32 %v605, %v622
    %v903 = vadd.f32 %v606, %v622
    %v904 = vadd.f32 %v607, %v622
    %v905 = vadd.f32 %v608, %v622
    %v906 = vadd.f32 %v609, %v622
    %v907 = vadd.f32 %v610, %v622
    %v908 = vadd.f32 %v611, %v622
    %v909 = vadd.f32 %v612, %v622
    %v910 = vadd.f32 %v613, %v622
    %v911 = vadd.f32 %v614, %v622
    %v912 = vadd.f32 %v615, %v622
    %v913 = vadd.f32 %v616, %v622
    %v914 = vadd.f32 %v617, %v622
    %v915 = vadd.f32 %v618, %v622
    %v916 = vadd.f32 %v619, %v622
    %v917 = vadd.f32 %v620, %v622
    %v918 = vadd.f32 %v621, %v622
    %919 = vst [vmem:[#allocation8] sm:$0xff] %v623
    %920 = vst [vmem:[#allocation8 + $0x8] sm:$0xff] %v624
    %921 = vst [vmem:[#allocation8 + $0x10] sm:$0xff] %v625
    %922 = vst [vmem:[#allocation8 + $0x18] sm:$0xff] %v626
    %923 = vst [vmem:[#allocation8 + $0x20] sm:$0xff] %v627
    %924 = vst [vmem:[#allocation8 + $0x28] sm:$0xff] %v628
    %925 = vst [vmem:[#allocation8 + $0x30] sm:$0xff] %v629
    %926 = vst [vmem:[#allocation8 + $0x38] sm:$0xff] %v630
    %927 = vst [vmem:[#allocation8 + $0x40] sm:$0xff] %v631
    %928 = vst [vmem:[#allocation8 + $0x48] sm:$0xff] %v632
    %929 = vst [vmem:[#allocation8 + $0x50] sm:$0xff] %v633
    %930 = vst [vmem:[#allocation8 + $0x58] sm:$0xff] %v634
    %931 = vst [vmem:[#allocation8 + $0x60] sm:$0xff] %v635
    %932 = vst [vmem:[#allocation8 + $0x68] sm:$0xff] %v636
    %933 = vst [vmem:[#allocation8 + $0x70] sm:$0xff] %v637
    %934 = vst [vmem:[#allocation8 + $0x78] sm:$0xff] %v638
    %935 = vst [vmem:[#allocation8 + $0x80] sm:$0xff] %v639
    %936 = vst [vmem:[#allocation8 + $0x88] sm:$0xff] %v640
    %937 = vst [vmem:[#allocation8 + $0x90] sm:$0xff] %v641
    %938 = vst [vmem:[#allocation8 + $0x98] sm:$0xff] %v642
    %939 = vst [vmem:[#allocation8 + $0xa0] sm:$0xff] %v643
    %940 = vst [vmem:[#allocation8 + $0xa8] sm:$0xff] %v644
    %941 = vst [vmem:[#allocation8 + $0xb0] sm:$0xff] %v645
    %942 = vst [vmem:[#allocation8 + $0xb8] sm:$0xff] %v646
    %943 = vst [vmem:[#allocation8 + $0xc0] sm:$0xff] %v647
    %944 = vst [vmem:[#allocation8 + $0xc8] sm:$0xff] %v648
    %945 = vst [vmem:[#allocation8 + $0xd0] sm:$0xff] %v649
    %946 = vst [vmem:[#allocation8 + $0xd8] sm:$0xff] %v650
    %947 = vst [vmem:[#allocation8 + $0xe0] sm:$0xff] %v651
    %948 = vst [vmem:[#allocation8 + $0xe8] sm:$0xff] %v652
    %949 = vst [vmem:[#allocation8 + $0xf0] sm:$0xff] %v653
    %950 = vst [vmem:[#allocation8 + $0xf8] sm:$0xff] %v654
    %951 = vst [vmem:[#allocation8 + $0x100] sm:$0xff] %v655
    %952 = vst [vmem:[#allocation8 + $0x108] sm:$0xff] %v656
    %953 = vst [vmem:[#allocation8 + $0x110] sm:$0xff] %v657
    %954 = vst [vmem:[#allocation8 + $0x118] sm:$0xff] %v658
    %955 = vst [vmem:[#allocation8 + $0x120] sm:$0xff] %v659
    %956 = vst [vmem:[#allocation8 + $0x128] sm:$0xff] %v660
    %957 = vst [vmem:[#allocation8 + $0x130] sm:$0xff] %v661
    %958 = vst [vmem:[#allocation8 + $0x138] sm:$0xff] %v662
    %959 = vst [vmem:[#allocation8 + $0x140] sm:$0xff] %v663
    %960 = vst [vmem:[#allocation8 + $0x148] sm:$0xff] %v664
    %961 = vst [vmem:[#allocation8 + $0x150] sm:$0xff] %v665
    %962 = vst [vmem:[#allocation8 + $0x158] sm:$0xff] %v666
    %963 = vst [vmem:[#allocation8 + $0x160] sm:$0xff] %v667
    %964 = vst [vmem:[#allocation8 + $0x168] sm:$0xff] %v668
    %965 = vst [vmem:[#allocation8 + $0x170] sm:$0xff] %v669
    %966 = vst [vmem:[#allocation8 + $0x178] sm:$0xff] %v670
    %967 = vst [vmem:[#allocation8 + $0x180] sm:$0xff] %v671
    %968 = vst [vmem:[#allocation8 + $0x188] sm:$0xff] %v672
    %969 = vst [vmem:[#allocation8 + $0x190] sm:$0xff] %v673
    %970 = vst [vmem:[#allocation8 + $0x198] sm:$0xff] %v674
    %971 = vst [vmem:[#allocation8 + $0x1a0] sm:$0xff] %v675
    %972 = vst [vmem:[#allocation8 + $0x1a8] sm:$0xff] %v676
    %973 = vst [vmem:[#allocation8 + $0x1b0] sm:$0xff] %v677
    %974 = vst [vmem:[#allocation8 + $0x1b8] sm:$0xff] %v678
    %975 = vst [vmem:[#allocation8 + $0x1c0] sm:$0xff] %v679
    %976 = vst [vmem:[#allocation8 + $0x1c8] sm:$0xff] %v680
    %977 = vst [vmem:[#allocation8 + $0x1d0] sm:$0xff] %v681
    %978 = vst [vmem:[#allocation8 + $0x1d8] sm:$0xff] %v682
    %979 = vst [vmem:[#allocation8 + $0x1e0] sm:$0xff] %v683
    %980 = vst [vmem:[#allocation8 + $0x1e8] sm:$0xff] %v684
    %981 = vst [vmem:[#allocation8 + $0x1f0] sm:$0xff] %v685
    %982 = vst [vmem:[#allocation8 + $0x1f8] sm:$0xff] %v686
    %983 = vst [vmem:[#allocation8 + $0x200] sm:$0xff] %v687
    %984 = vst [vmem:[#allocation8 + $0x208] sm:$0xff] %v688
    %985 = vst [vmem:[#allocation8 + $0x210] sm:$0xff] %v689
    %986 = vst [vmem:[#allocation8 + $0x218] sm:$0xff] %v690
    %987 = vst [vmem:[#allocation8 + $0x220] sm:$0xff] %v691
    %988 = vst [vmem:[#allocation8 + $0x228] sm:$0xff] %v692
    %989 = vst [vmem:[#allocation8 + $0x230] sm:$0xff] %v693
    %990 = vst [vmem:[#allocation8 + $0x238] sm:$0xff] %v694
    %991 = vst [vmem:[#allocation8 + $0x240] sm:$0xff] %v695
    %992 = vst [vmem:[#allocation8 + $0x248] sm:$0xff] %v696
    %993 = vst [vmem:[#allocation8 + $0x250] sm:$0xff] %v697
    %994 = vst [vmem:[#allocation8 + $0x258] sm:$0xff] %v698
    %995 = vst [vmem:[#allocation8 + $0x260] sm:$0xff] %v699
    %996 = vst [vmem:[#allocation8 + $0x268] sm:$0xff] %v700
    %997 = vst [vmem:[#allocation8 + $0x270] sm:$0xff] %v701
    %998 = vst [vmem:[#allocation8 + $0x278] sm:$0xff] %v702
    %999 = vst [vmem:[#allocation8 + $0x280] sm:$0xff] %v703
    %1000 = vst [vmem:[#allocation8 + $0x288] sm:$0xff] %v704
    %1001 = vst [vmem:[#allocation8 + $0x290] sm:$0xff] %v705
    %1002 = vst [vmem:[#allocation8 + $0x298] sm:$0xff] %v706
    %1003 = vst [vmem:[#allocation8 + $0x2a0] sm:$0xff] %v707
    %1004 = vst [vmem:[#allocation8 + $0x2a8] sm:$0xff] %v708
    %1005 = vst [vmem:[#allocation8 + $0x2b0] sm:$0xff] %v709
    %1006 = vst [vmem:[#allocation8 + $0x2b8] sm:$0xff] %v710
    %1007 = vst [vmem:[#allocation8 + $0x2c0] sm:$0xff] %v711
    %1008 = vst [vmem:[#allocation8 + $0x2c8] sm:$0xff] %v712
    %1009 = vst [vmem:[#allocation8 + $0x2d0] sm:$0xff] %v713
    %1010 = vst [vmem:[#allocation8 + $0x2d8] sm:$0xff] %v714
    %1011 = vst [vmem:[#allocation8 + $0x2e0] sm:$0xff] %v715
    %1012 = vst [vmem:[#allocation8 + $0x2e8] sm:$0xff] %v716
    %1013 = vst [vmem:[#allocation8 + $0x2f0] sm:$0xff] %v717
    %1014 = vst [vmem:[#allocation8 + $0x2f8] sm:$0xff] %v718
    %1015 = vst [vmem:[#allocation8 + $0x300] sm:$0xff] %v719
    %1016 = vst [vmem:[#allocation8 + $0x308] sm:$0xff] %v720
    %1017 = vst [vmem:[#allocation8 + $0x310] sm:$0xff] %v721
    %1018 = vst [vmem:[#allocation8 + $0x318] sm:$0xff] %v722
    %1019 = vst [vmem:[#allocation8 + $0x320] sm:$0xff] %v723
    %1020 = vst [vmem:[#allocation8 + $0x328] sm:$0xff] %v724
    %1021 = vst [vmem:[#allocation8 + $0x330] sm:$0xff] %v725
    %1022 = vst [vmem:[#allocation8 + $0x338] sm:$0xff] %v726
    %1023 = vst [vmem:[#allocation8 + $0x340] sm:$0xff] %v727
    %1024 = vst [vmem:[#allocation8 + $0x348] sm:$0xff] %v728
    %1025 = vst [vmem:[#allocation8 + $0x350] sm:$0xff] %v729
    %1026 = vst [vmem:[#allocation8 + $0x358] sm:$0xff] %v730
    %1027 = vst [vmem:[#allocation8 + $0x360] sm:$0xff] %v731
    %1028 = vst [vmem:[#allocation8 + $0x368] sm:$0xff] %v732
    %1029 = vst [vmem:[#allocation8 + $0x370] sm:$0xff] %v733
    %1030 = vst [vmem:[#allocation8 + $0x378] sm:$0xff] %v734
    %1031 = vst [vmem:[#allocation8 + $0x380] sm:$0xff] %v735
    %1032 = vst [vmem:[#allocation8 + $0x388] sm:$0xff] %v736
    %1033 = vst [vmem:[#allocation8 + $0x390] sm:$0xff] %v737
    %1034 = vst [vmem:[#allocation8 + $0x398] sm:$0xff] %v738
    %1035 = vst [vmem:[#allocation8 + $0x3a0] sm:$0xff] %v739
    %1036 = vst [vmem:[#allocation8 + $0x3a8] sm:$0xff] %v740
    %1037 = vst [vmem:[#allocation8 + $0x3b0] sm:$0xff] %v741
    %1038 = vst [vmem:[#allocation8 + $0x3b8] sm:$0xff] %v742
    %1039 = vst [vmem:[#allocation8 + $0x3c0] sm:$0xff] %v743
    %1040 = vst [vmem:[#allocation8 + $0x3c8] sm:$0xff] %v744
    %1041 = vst [vmem:[#allocation8 + $0x3d0] sm:$0xff] %v745
    %1042 = vst [vmem:[#allocation8 + $0x3d8] sm:$0xff] %v746
    %1043 = vst [vmem:[#allocation8 + $0x3e0] sm:$0xff] %v747
    %1044 = vst [vmem:[#allocation8 + $0x3e8] sm:$0xff] %v748
    %1045 = vst [vmem:[#allocation8 + $0x3f0] sm:$0xff] %v749
    %1046 = vst [vmem:[#allocation8 + $0x3f8] sm:$0xff] %v750
    %1047 = vst [vmem:[#allocation8 + $0x400] sm:$0xff] %v751
    %1048 = vst [vmem:[#allocation8 + $0x408] sm:$0xff] %v752
    %1049 = vst [vmem:[#allocation8 + $0x410] sm:$0xff] %v753
    %1050 = vst [vmem:[#allocation8 + $0x418] sm:$0xff] %v754
    %1051 = vst [vmem:[#allocation8 + $0x420] sm:$0xff] %v755
    %1052 = vst [vmem:[#allocation8 + $0x428] sm:$0xff] %v756
    %1053 = vst [vmem:[#allocation8 + $0x430] sm:$0xff] %v757
    %1054 = vst [vmem:[#allocation8 + $0x438] sm:$0xff] %v758
    %1055 = vst [vmem:[#allocation8 + $0x440] sm:$0xff] %v759
    %1056 = vst [vmem:[#allocation8 + $0x448] sm:$0xff] %v760
    %1057 = vst [vmem:[#allocation8 + $0x450] sm:$0xff] %v761
    %1058 = vst [vmem:[#allocation8 + $0x458] sm:$0xff] %v762
    %1059 = vst [vmem:[#allocation8 + $0x460] sm:$0xff] %v763
    %1060 = vst [vmem:[#allocation8 + $0x468] sm:$0xff] %v764
    %1061 = vst [vmem:[#allocation8 + $0x470] sm:$0xff] %v765
    %1062 = vst [vmem:[#allocation8 + $0x478] sm:$0xff] %v766
    %1063 = vst [vmem:[#allocation8 + $0x480] sm:$0xff] %v767
    %1064 = vst [vmem:[#allocation8 + $0x488] sm:$0xff] %v768
    %1065 = vst [vmem:[#allocation8 + $0x490] sm:$0xff] %v769
    %1066 = vst [vmem:[#allocation8 + $0x498] sm:$0xff] %v770
    %1067 = vst [vmem:[#allocation8 + $0x4a0] sm:$0xff] %v771
    %1068 = vst [vmem:[#allocation8 + $0x4a8] sm:$0xff] %v772
    %1069 = vst [vmem:[#allocation8 + $0x4b0] sm:$0xff] %v773
    %1070 = vst [vmem:[#allocation8 + $0x4b8] sm:$0xff] %v774
    %1071 = vst [vmem:[#allocation8 + $0x4c0] sm:$0xff] %v775
    %1072 = vst [vmem:[#allocation8 + $0x4c8] sm:$0xff] %v776
    %1073 = vst [vmem:[#allocation8 + $0x4d0] sm:$0xff] %v777
    %1074 = vst [vmem:[#allocation8 + $0x4d8] sm:$0xff] %v778
    %1075 = vst [vmem:[#allocation8 + $0x4e0] sm:$0xff] %v779
    %1076 = vst [vmem:[#allocation8 + $0x4e8] sm:$0xff] %v780
    %1077 = vst [vmem:[#allocation8 + $0x4f0] sm:$0xff] %v781
    %1078 = vst [vmem:[#allocation8 + $0x4f8] sm:$0xff] %v782
    %1079 = vst [vmem:[#allocation8 + $0x500] sm:$0xff] %v783
    %1080 = vst [vmem:[#allocation8 + $0x508] sm:$0xff] %v784
    %1081 = vst [vmem:[#allocation8 + $0x510] sm:$0xff] %v785
    %1082 = vst [vmem:[#allocation8 + $0x518] sm:$0xff] %v786
    %1083 = vst [vmem:[#allocation8 + $0x520] sm:$0xff] %v787
    %1084 = vst [vmem:[#allocation8 + $0x528] sm:$0xff] %v788
    %1085 = vst [vmem:[#allocation8 + $0x530] sm:$0xff] %v789
    %1086 = vst [vmem:[#allocation8 + $0x538] sm:$0xff] %v790
    %1087 = vst [vmem:[#allocation8 + $0x540] sm:$0xff] %v791
    %1088 = vst [vmem:[#allocation8 + $0x548] sm:$0xff] %v792
    %1089 = vst [vmem:[#allocation8 + $0x550] sm:$0xff] %v793
    %1090 = vst [vmem:[#allocation8 + $0x558] sm:$0xff] %v794
    %1091 = vst [vmem:[#allocation8 + $0x560] sm:$0xff] %v795
    %1092 = vst [vmem:[#allocation8 + $0x568] sm:$0xff] %v796
    %1093 = vst [vmem:[#allocation8 + $0x570] sm:$0xff] %v797
    %1094 = vst [vmem:[#allocation8 + $0x578] sm:$0xff] %v798
    %1095 = vst [vmem:[#allocation8 + $0x580] sm:$0xff] %v799
    %1096 = vst [vmem:[#allocation8 + $0x588] sm:$0xff] %v800
    %1097 = vst [vmem:[#allocation8 + $0x590] sm:$0xff] %v801
    %1098 = vst [vmem:[#allocation8 + $0x598] sm:$0xff] %v802
    %1099 = vst [vmem:[#allocation8 + $0x5a0] sm:$0xff] %v803
    %1100 = vst [vmem:[#allocation8 + $0x5a8] sm:$0xff] %v804
    %1101 = vst [vmem:[#allocation8 + $0x5b0] sm:$0xff] %v805
    %1102 = vst [vmem:[#allocation8 + $0x5b8] sm:$0xff] %v806
    %1103 = vst [vmem:[#allocation8 + $0x5c0] sm:$0xff] %v807
    %1104 = vst [vmem:[#allocation8 + $0x5c8] sm:$0xff] %v808
    %1105 = vst [vmem:[#allocation8 + $0x5d0] sm:$0xff] %v809
    %1106 = vst [vmem:[#allocation8 + $0x5d8] sm:$0xff] %v810
    %1107 = vst [vmem:[#allocation8 + $0x5e0] sm:$0xff] %v811
    %1108 = vst [vmem:[#allocation8 + $0x5e8] sm:$0xff] %v812
    %1109 = vst [vmem:[#allocation8 + $0x5f0] sm:$0xff] %v813
    %1110 = vst [vmem:[#allocation8 + $0x5f8] sm:$0xff] %v814
    %1111 = vst [vmem:[#allocation8 + $0x600] sm:$0xff] %v815
    %1112 = vst [vmem:[#allocation8 + $0x608] sm:$0xff] %v816
    %1113 = vst [vmem:[#allocation8 + $0x610] sm:$0xff] %v817
    %1114 = vst [vmem:[#allocation8 + $0x618] sm:$0xff] %v818
    %1115 = vst [vmem:[#allocation8 + $0x620] sm:$0xff] %v819
    %1116 = vst [vmem:[#allocation8 + $0x628] sm:$0xff] %v820
    %1117 = vst [vmem:[#allocation8 + $0x630] sm:$0xff] %v821
    %1118 = vst [vmem:[#allocation8 + $0x638] sm:$0xff] %v822
    %1119 = vst [vmem:[#allocation8 + $0x640] sm:$0xff] %v823
    %1120 = vst [vmem:[#allocation8 + $0x648] sm:$0xff] %v824
    %1121 = vst [vmem:[#allocation8 + $0x650] sm:$0xff] %v825
    %1122 = vst [vmem:[#allocation8 + $0x658] sm:$0xff] %v826
    %1123 = vst [vmem:[#allocation8 + $0x660] sm:$0xff] %v827
    %1124 = vst [vmem:[#allocation8 + $0x668] sm:$0xff] %v828
    %1125 = vst [vmem:[#allocation8 + $0x670] sm:$0xff] %v829
    %1126 = vst [vmem:[#allocation8 + $0x678] sm:$0xff] %v830
    %1127 = vst [vmem:[#allocation8 + $0x680] sm:$0xff] %v831
    %1128 = vst [vmem:[#allocation8 + $0x688] sm:$0xff] %v832
    %1129 = vst [vmem:[#allocation8 + $0x690] sm:$0xff] %v833
    %1130 = vst [vmem:[#allocation8 + $0x698] sm:$0xff] %v834
    %1131 = vst [vmem:[#allocation8 + $0x6a0] sm:$0xff] %v835
    %1132 = vst [vmem:[#allocation8 + $0x6a8] sm:$0xff] %v836
    %1133 = vst [vmem:[#allocation8 + $0x6b0] sm:$0xff] %v837
    %1134 = vst [vmem:[#allocation8 + $0x6b8] sm:$0xff] %v838
    %1135 = vst [vmem:[#allocation8 + $0x6c0] sm:$0xff] %v839
    %1136 = vst [vmem:[#allocation8 + $0x6c8] sm:$0xff] %v840
    %1137 = vst [vmem:[#allocation8 + $0x6d0] sm:$0xff] %v841
    %1138 = vst [vmem:[#allocation8 + $0x6d8] sm:$0xff] %v842
    %1139 = vst [vmem:[#allocation8 + $0x6e0] sm:$0xff] %v843
    %1140 = vst [vmem:[#allocation8 + $0x6e8] sm:$0xff] %v844
    %1141 = vst [vmem:[#allocation8 + $0x6f0] sm:$0xff] %v845
    %1142 = vst [vmem:[#allocation8 + $0x6f8] sm:$0xff] %v846
    %1143 = vst [vmem:[#allocation8 + $0x700] sm:$0xff] %v847
    %1144 = vst [vmem:[#allocation8 + $0x708] sm:$0xff] %v848
    %1145 = vst [vmem:[#allocation8 + $0x710] sm:$0xff] %v849
    %1146 = vst [vmem:[#allocation8 + $0x718] sm:$0xff] %v850
    %1147 = vst [vmem:[#allocation8 + $0x720] sm:$0xff] %v851
    %1148 = vst [vmem:[#allocation8 + $0x728] sm:$0xff] %v852
    %1149 = vst [vmem:[#allocation8 + $0x730] sm:$0xff] %v853
    %1150 = vst [vmem:[#allocation8 + $0x738] sm:$0xff] %v854
    %1151 = vst [vmem:[#allocation8 + $0x740] sm:$0xff] %v855
    %1152 = vst [vmem:[#allocation8 + $0x748] sm:$0xff] %v856
    %1153 = vst [vmem:[#allocation8 + $0x750] sm:$0xff] %v857
    %1154 = vst [vmem:[#allocation8 + $0x758] sm:$0xff] %v858
    %1155 = vst [vmem:[#allocation8 + $0x760] sm:$0xff] %v859
    %1156 = vst [vmem:[#allocation8 + $0x768] sm:$0xff] %v860
    %1157 = vst [vmem:[#allocation8 + $0x770] sm:$0xff] %v861
    %1158 = vst [vmem:[#allocation8 + $0x778] sm:$0xff] %v862
    %1159 = vst [vmem:[#allocation8 + $0x780] sm:$0xff] %v863
    %1160 = vst [vmem:[#allocation8 + $0x788] sm:$0xff] %v864
    %1161 = vst [vmem:[#allocation8 + $0x790] sm:$0xff] %v865
    %1162 = vst [vmem:[#allocation8 + $0x798] sm:$0xff] %v866
    %1163 = vst [vmem:[#allocation8 + $0x7a0] sm:$0xff] %v867
    %1164 = vst [vmem:[#allocation8 + $0x7a8] sm:$0xff] %v868
    %1165 = vst [vmem:[#allocation8 + $0x7b0] sm:$0xff] %v869
    %1166 = vst [vmem:[#allocation8 + $0x7b8] sm:$0xff] %v870
    %1167 = vst [vmem:[#allocation8 + $0x7c0] sm:$0xff] %v871
    %1168 = vst [vmem:[#allocation8 + $0x7c8] sm:$0xff] %v872
    %1169 = vst [vmem:[#allocation8 + $0x7d0] sm:$0xff] %v873
    %1170 = vst [vmem:[#allocation8 + $0x7d8] sm:$0xff] %v874
    %1171 = vst [vmem:[#allocation8 + $0x7e0] sm:$0xff] %v875
    %1172 = vst [vmem:[#allocation8 + $0x7e8] sm:$0xff] %v876
    %1173 = vst [vmem:[#allocation8 + $0x7f0] sm:$0xff] %v877
    %1174 = vst [vmem:[#allocation8 + $0x7f8] sm:$0xff] %v878
    %1175 = vst [vmem:[#allocation8 + $0x800] sm:$0xff] %v879
    %1176 = vst [vmem:[#allocation8 + $0x808] sm:$0xff] %v880
    %1177 = vst [vmem:[#allocation8 + $0x810] sm:$0xff] %v881
    %1178 = vst [vmem:[#allocation8 + $0x818] sm:$0xff] %v882
    %1179 = vst [vmem:[#allocation8 + $0x820] sm:$0xff] %v883
    %1180 = vst [vmem:[#allocation8 + $0x828] sm:$0xff] %v884
    %1181 = vst [vmem:[#allocation8 + $0x830] sm:$0xff] %v885
    %1182 = vst [vmem:[#allocation8 + $0x838] sm:$0xff] %v886
    %1183 = vst [vmem:[#allocation8 + $0x840] sm:$0xff] %v887
    %1184 = vst [vmem:[#allocation8 + $0x848] sm:$0xff] %v888
    %1185 = vst [vmem:[#allocation8 + $0x850] sm:$0xff] %v889
    %1186 = vst [vmem:[#allocation8 + $0x858] sm:$0xff] %v890
    %1187 = vst [vmem:[#allocation8 + $0x860] sm:$0xff] %v891
    %1188 = vst [vmem:[#allocation8 + $0x868] sm:$0xff] %v892
    %1189 = vst [vmem:[#allocation8 + $0x870] sm:$0xff] %v893
    %1190 = vst [vmem:[#allocation8 + $0x878] sm:$0xff] %v894
    %1191 = vst [vmem:[#allocation8 + $0x880] sm:$0xff] %v895
    %1192 = vst [vmem:[#allocation8 + $0x888] sm:$0xff] %v896
    %1193 = vst [vmem:[#allocation8 + $0x890] sm:$0xff] %v897
    %1194 = vst [vmem:[#allocation8 + $0x898] sm:$0xff] %v898
    %1195 = vst [vmem:[#allocation8 + $0x8a0] sm:$0xff] %v899
    %1196 = vst [vmem:[#allocation8 + $0x8a8] sm:$0xff] %v900
    %1197 = vst [vmem:[#allocation8 + $0x8b0] sm:$0xff] %v901
    %1198 = vst [vmem:[#allocation8 + $0x8b8] sm:$0xff] %v902
    %1199 = vst [vmem:[#allocation8 + $0x8c0] sm:$0xff] %v903
    %1200 = vst [vmem:[#allocation8 + $0x8c8] sm:$0xff] %v904
    %1201 = vst [vmem:[#allocation8 + $0x8d0] sm:$0xff] %v905
    %1202 = vst [vmem:[#allocation8 + $0x8d8] sm:$0xff] %v906
    %1203 = vst [vmem:[#allocation8 + $0x8e0] sm:$0xff] %v907
    %1204 = vst [vmem:[#allocation8 + $0x8e8] sm:$0xff] %v908
    %1205 = vst [vmem:[#allocation8 + $0x8f0] sm:$0xff] %v909
    %1206 = vst [vmem:[#allocation8 + $0x8f8] sm:$0xff] %v910
    %1207 = vst [vmem:[#allocation8 + $0x900] sm:$0x1f] %v911
    %1208 = vst [vmem:[#allocation8 + $0x908] sm:$0x1f] %v912
    %1209 = vst [vmem:[#allocation8 + $0x910] sm:$0x1f] %v913
    %1210 = vst [vmem:[#allocation8 + $0x918] sm:$0x1f] %v914
    %1211 = vst [vmem:[#allocation8 + $0x920] sm:$0x1f] %v915
    %1212 = vst [vmem:[#allocation8 + $0x928] sm:$0x1f] %v916
    %1213 = vst [vmem:[#allocation8 + $0x930] sm:$0x1f] %v917
    %1214 = vst [vmem:[#allocation8 + $0x938] sm:$0x1f] %v918
    // Predicated region
    $region10: #{tpu_custom_call.1} parent=1 // pred_check
      _
    $region11: #{tpu_custom_call.1} parent=1 // pred_check_branch
      %1216 = sbr.rel (0) target = $region13
    $region12: #{tpu_custom_call.1} parent=1 // pred_region
      %s1218 = ssub.s32 37888, 37888
      %1219 = vsyncadd [#allocation7], %s1218
      %s1220 = sshll.u32 [#allocation8], 4
      %s1221 = int_to_ptr.vmem [resolvable:$true] %s1220
      %1226 = dma.vmem_to_hbm [thread:$0]  %s1221, 37888, %s3, [#allocation7], 1024, 1024, 64
    $region13: #{tpu_custom_call.1} parent=1 // pred_fallthru
      _
    // Predicated region
    $region14: #{tpu_custom_call.1} parent=1 // pred_check
      _
    $region15: #{tpu_custom_call.1} parent=1 // pred_check_branch
      %1228 = sbr.rel (0) target = $region17
    $region16: #{tpu_custom_call.1} parent=1 // pred_region
      %1229 = dma.done [#allocation7], 37888
    $region17: #{tpu_custom_call.1} parent=1 // pred_fallthru
      _
    %1230 = vsyncpa [#allocation6], 1
    %1231 = vsyncpa [#allocation7], 1

</llo_original>
